<compile_context>
chip_gen: v7x
topology: tpu7x:2x2x1
jax: 0.10.0
libtpu: 0.0.40
codegen_flags: <defaults>
</compile_context>

<pallas_src>
import jax
import jax.numpy as jnp
from jax.experimental import pallas as pl
from jax.experimental.pallas import tpu as pltpu


def _round_up(x, m):
    return (x + m - 1) // m * m


def value_net_kernel(obs_ref, w1_ref, b1_ref, w2_ref, b2_ref, out_ref):
    x = obs_ref[...]                                        # (TB, S) f32, batch on sublanes
    # Hidden layer, transposed: h = W1 @ x^T -> (H, TB); batch moves onto lanes (MXU, trans_b).
    h = jax.lax.dot_general(
        w1_ref[...], x,
        dimension_numbers=(((1,), (1,)), ((), ())),          # contract over space_n
        preferred_element_type=jnp.float32,
    )
    h = jnp.tanh(h + b1_ref[...])                            # b1 (H,1) lane-broadcast; tanh on EUP
    # Output layer: skip the N=1 matmul -> VPU multiply + sublane reduce.
    v = jnp.sum(h * w2_ref[...], axis=0, keepdims=True) + b2_ref[0]   # (1, TB), lane-dense
    out_ref[...] = v.astype(out_ref.dtype)


def value_network(obs, w1, b1, w2, b2, *, block_b=512):
    """obs (B, space_n) f32 -> (B, 1) f32, computing tanh(obs @ W1^T + b1) @ W2 + b2.

    Parameter layouts (PyTorch-native where possible):
      w1: (64, space_n)  == lin1.weight
      b1: (64, 1)        == lin1.bias[:, None]
      w2: (64, 1)        == lin2.weight.T
      b2: (1,)           == lin2.bias
    """
    B, S = obs.shape
    H = w1.shape[0]

    # Batch tile: large for pipelining; pad B so the grid divides evenly.
    TB = block_b if B > block_b else _round_up(max(B, 8), 8)
    B_pad = _round_up(B, TB)
    if B_pad != B:
        obs = jnp.pad(obs, ((0, B_pad - B), (0, 0)))
    grid = (B_pad // TB,)

    out = pl.pallas_call(
        value_net_kernel,
        out_shape=jax.ShapeDtypeStruct((1, B_pad), jnp.float32),
        grid=grid,
        in_specs=[
            pl.BlockSpec((TB, S), lambda i: (i, 0)),              # obs tile (pipelined DMA)
            pl.BlockSpec((H, S), lambda i: (0, 0)),               # W1: VMEM-resident
            pl.BlockSpec((H, 1), lambda i: (0, 0)),               # b1: VMEM-resident
            pl.BlockSpec((H, 1), lambda i: (0, 0)),               # W2 column: VMEM-resident
            pl.BlockSpec(memory_space=pltpu.MemorySpace.SMEM),    # b2 scalar via SMEM
        ],
        out_specs=pl.BlockSpec((1, TB), lambda i: (0, i)),        # lane-dense output slab
        compiler_params=pltpu.CompilerParams(
            dimension_semantics=("parallel",),                    # shard batch tiles across TCs
        ),
        cost_estimate=pl.CostEstimate(
            flops=2 * B_pad * (S * H + H),
            transcendentals=B_pad * H,
            bytes_accessed=(B_pad * S + B_pad + H * S + 2 * H + 1) * 4,
        ),
    )(obs, w1, b1, w2, b2)

    return out[0, :B, None]                                       # (B, 1); drop pad rows


def init_params(key, space_n, hidden=64):
    """Deterministic init mimicking nn.Linear default (uniform +/- 1/sqrt(fan_in))."""
    k1, k2, k3, k4 = jax.random.split(key, 4)
    lim1 = 1.0 / jnp.sqrt(jnp.float32(space_n))
    lim2 = 1.0 / jnp.sqrt(jnp.float32(hidden))
    w1 = jax.random.uniform(k1, (hidden, space_n), jnp.float32, -lim1, lim1)  # lin1.weight
    b1 = jax.random.uniform(k2, (hidden, 1), jnp.float32, -lim1, lim1)        # lin1.bias
    w2 = jax.random.uniform(k3, (hidden, 1), jnp.float32, -lim2, lim2)        # lin2.weight^T
    b2 = jax.random.uniform(k4, (1,), jnp.float32, -lim2, lim2)               # lin2.bias
    return w1, b1, w2, b2


def _ref_forward(obs, w1, b1, w2, b2):
    # Same math as the PyTorch forward.
    return jnp.tanh(obs @ w1.T + b1[:, 0]) @ w2 + b2


if __name__ == "__main__":
    key = jax.random.PRNGKey(0)
    k_obs, k_par, k_obs2 = jax.random.split(key, 3)

    B, space_n = 8, 8  # small synthetic shapes consistent with ValueNetwork(space_n)
    w1, b1, w2, b2 = init_params(k_par, space_n)

    # Small single-tile case.
    obs = jax.random.normal(k_obs, (B, space_n), dtype=jnp.float32)
    out = jax.block_until_ready(value_network(obs, w1, b1, w2, b2))
    ref = _ref_forward(obs, w1, b1, w2, b2)
    assert out.shape == (B, 1)
    assert jnp.allclose(out, ref, atol=1e-5, rtol=1e-5)

    # Multi-tile case exercising the batch grid, padding and lane-dense output.
    B2 = 600
    obs2 = jax.random.normal(k_obs2, (B2, space_n), dtype=jnp.float32)
    out2 = jax.block_until_ready(value_network(obs2, w1, b1, w2, b2, block_b=256))
    ref2 = _ref_forward(obs2, w1, b1, w2, b2)
    assert out2.shape == (B2, 1)
    assert jnp.allclose(out2, ref2, atol=1e-5, rtol=1e-5)

    print("KERNEL_OK")
</pallas_src>

<mosaic_0001>
module attributes {stable_mosaic.version = 11 : i64} {
  func.func @value_net_kernel(%arg0: i32, %arg1: memref<8x8xf32, #tpu.memory_space<vmem>>, %arg2: memref<64x8xf32, #tpu.memory_space<vmem>>, %arg3: memref<64x1xf32, #tpu.memory_space<vmem>>, %arg4: memref<64x1xf32, #tpu.memory_space<vmem>>, %arg5: memref<1xf32, #tpu.memory_space<smem>>, %arg6: memref<1x8xf32, #tpu.memory_space<vmem>>) attributes {dimension_semantics = [#tpu.dimension_semantics<parallel>], iteration_bounds = array<i64: 1>, scalar_prefetch = 0 : i64, scratch_operands = 0 : i64, tpu.core_type = #tpu.core_type<tc>, window_params = [{transform_indices = @transform_0, window_bounds = array<i64: 8, 8>}, {pipeline_mode = #tpu.pipeline_mode<synchronous>, transform_indices = @transform_1, window_bounds = array<i64: 64, 8>}, {pipeline_mode = #tpu.pipeline_mode<synchronous>, transform_indices = @transform_2, window_bounds = array<i64: 64, 1>}, {pipeline_mode = #tpu.pipeline_mode<synchronous>, transform_indices = @transform_3, window_bounds = array<i64: 64, 1>}, {transform_indices = @transform_4, window_bounds = array<i64: 1>}, {transform_indices = @transform_5, window_bounds = array<i64: 1, 8>}]} {
    %c0 = arith.constant 0 : index
    %c0_0 = arith.constant 0 : index
    %0 = vector.load %arg1[%c0, %c0_0] : memref<8x8xf32, #tpu.memory_space<vmem>>, vector<8x8xf32>
    %c0_1 = arith.constant 0 : index
    %c0_2 = arith.constant 0 : index
    %1 = vector.load %arg2[%c0_1, %c0_2] : memref<64x8xf32, #tpu.memory_space<vmem>>, vector<64x8xf32>
    %cst = arith.constant dense<0.000000e+00> : vector<64x8xf32>
    %2 = tpu.matmul %1, %0, %cst {dimension_numbers = #tpu.dot_dimension_numbers<[1], [1], [0], [0], [0, 0, 1, 0], [], []>} : vector<64x8xf32>, vector<8x8xf32>, vector<64x8xf32> -> vector<64x8xf32>
    %c0_3 = arith.constant 0 : index
    %c0_4 = arith.constant 0 : index
    %3 = vector.load %arg3[%c0_3, %c0_4] : memref<64x1xf32, #tpu.memory_space<vmem>>, vector<64x1xf32>
    %4 = vector.broadcast %3 : vector<64x1xf32> to vector<64x8xf32>
    %5 = arith.addf %2, %4 : vector<64x8xf32>
    %6 = math.tanh %5 : vector<64x8xf32>
    %c0_5 = arith.constant 0 : index
    %c0_6 = arith.constant 0 : index
    %7 = vector.load %arg4[%c0_5, %c0_6] : memref<64x1xf32, #tpu.memory_space<vmem>>, vector<64x1xf32>
    %8 = vector.broadcast %7 : vector<64x1xf32> to vector<64x8xf32>
    %9 = arith.mulf %6, %8 : vector<64x8xf32>
    %cst_7 = arith.constant dense<0.000000e+00> : vector<8xf32>
    %10 = vector.multi_reduction <add>, %9, %cst_7 [0] : vector<64x8xf32> to vector<8xf32>
    %11 = vector.shape_cast %10 : vector<8xf32> to vector<1x8xf32>
    %c0_8 = arith.constant 0 : index
    %12 = memref.load %arg5[%c0_8] : memref<1xf32, #tpu.memory_space<smem>>
    %13 = vector.broadcast %12 : f32 to vector<1x8xf32>
    %14 = arith.addf %11, %13 : vector<1x8xf32>
    %c0_9 = arith.constant 0 : index
    %c0_10 = arith.constant 0 : index
    %15 = vector.load %arg6[%c0_9, %c0_10] : memref<1x8xf32, #tpu.memory_space<vmem>>, vector<1x8xf32>
    tpu.vector_store %arg6[%c0_9, %c0_10], %14 {strides = array<i32>} : memref<1x8xf32, #tpu.memory_space<vmem>>, vector<1x8xf32>,
    return
  }
  func.func @transform_0(%arg0: i32) -> (i32, i32) {
    %c0_i32 = arith.constant 0 : i32
    %c0_i32_0 = arith.constant 0 : i32
    return %arg0, %c0_i32 : i32, i32
  }
  func.func @transform_1(%arg0: i32) -> (i32, i32) {
    %c0_i32 = arith.constant 0 : i32
    %c0_i32_0 = arith.constant 0 : i32
    %c0_i32_1 = arith.constant 0 : i32
    return %c0_i32, %c0_i32_0 : i32, i32
  }
  func.func @transform_2(%arg0: i32) -> (i32, i32) {
    %c0_i32 = arith.constant 0 : i32
    %c0_i32_0 = arith.constant 0 : i32
    %c0_i32_1 = arith.constant 0 : i32
    return %c0_i32, %c0_i32_0 : i32, i32
  }
  func.func @transform_3(%arg0: i32) -> (i32, i32) {
    %c0_i32 = arith.constant 0 : i32
    %c0_i32_0 = arith.constant 0 : i32
    %c0_i32_1 = arith.constant 0 : i32
    return %c0_i32, %c0_i32_0 : i32, i32
  }
  func.func @transform_4(%arg0: i32) -> i32 {
    %c0_i32 = arith.constant 0 : i32
    %c0_i32_0 = arith.constant 0 : i32
    return %c0_i32 : i32
  }
  func.func @transform_5(%arg0: i32) -> (i32, i32) {
    %c0_i32 = arith.constant 0 : i32
    %c0_i32_0 = arith.constant 0 : i32
    return %c0_i32, %arg0 : i32, i32
  }
}

</mosaic_0001>

<llo_original>
// kernel: tpu_custom_call.1
$region0: #{tpu_custom_call.1}
  #allocation0 [shape = 'u32[]', space=smem, size = 0x4, offset = 0x4, fixed_abs, tag = 'smem constant byte address 0x4 - core index']
  #allocation1 [shape = 'u32[144,128]{1,0:T(1,128)}', space=vmem, size = 0x12000, scoped, tag = 'internal scratch']
  #allocation2 [shape = 'f32[1]{0:T(128)S(6)}', space=smem, size = 0x200, scoped, tag = 'scoped memory for tpu_custom_call.1']
  %s0 = inlined_call_operand.vmem [shape: f32[8,8], index: 0, kind: input, shape index: {}]
  %s1 = inlined_call_operand.vmem [shape: f32[64,8], index: 1, kind: input, shape index: {}]
  %s2 = inlined_call_operand.vmem [shape: f32[64,1], index: 2, kind: input, shape index: {}]
  %s3 = inlined_call_operand.vmem [shape: f32[64,1], index: 3, kind: input, shape index: {}]
  %s4 = inlined_call_operand.<no memory space> [shape: f32[1], index: 4, kind: input, shape index: {}]
  %s5 = inlined_call_operand.hbm [shape: f32[1,8], index: 5, kind: output, shape index: {}]
  %s6 = sld [smem:[#allocation0]]
  $region30: #{tpu_custom_call.1} parent=0
    _
  %s8 = ssub.s32 1, %s6
  %s9 = scalar_select 0, %s8, %s6
  %10 = sst [smem:[#allocation2]] %s4
  $region1: #{tpu_custom_call.1} parent=0
    #allocation3 [shape = 'u8[512]{0}', space=vmem, size = 0x400, scoped, tag = 'output window, operand 0, single buffered']
    #allocation4 [shape = 's32[1]{0}', space=sflag, size = 0x4, scoped, tag = 'scoped memory for tpu_custom_call.1']
    %11 = vsyncpa [#allocation4], 0
    // Predicated region
    $region2: #{tpu_custom_call.1} parent=1 // pred_check
      _
    $region3: #{tpu_custom_call.1} parent=1 // pred_check_branch
      %13 = sbr.rel (0) target = $region5
    $region4: #{tpu_custom_call.1} parent=1 // pred_region
      _
    $region5: #{tpu_custom_call.1} parent=1 // pred_fallthru
      _
    // Predicated region
    $region6: #{tpu_custom_call.1} parent=1 // pred_check
      _
    $region7: #{tpu_custom_call.1} parent=1 // pred_check_branch
      %15 = sbr.rel (0) target = $region9
    $region8: #{tpu_custom_call.1} parent=1 // pred_region
      _
    $region9: #{tpu_custom_call.1} parent=1 // pred_fallthru
      _
    // Predicated region
    $region10: #{tpu_custom_call.1} parent=1 // pred_check
      _
    $region11: #{tpu_custom_call.1} parent=1 // pred_check_branch
      %17 = sbr.rel (0) target = $region13
    $region12: #{tpu_custom_call.1} parent=1 // pred_region
      _
    $region13: #{tpu_custom_call.1} parent=1 // pred_fallthru
      _
    // Predicated region
    $region14: #{tpu_custom_call.1} parent=1 // pred_check
      _
    $region15: #{tpu_custom_call.1} parent=1 // pred_check_branch
      %19 = sbr.rel (0) target = $region17
    $region16: #{tpu_custom_call.1} parent=1 // pred_region
      _
    $region17: #{tpu_custom_call.1} parent=1 // pred_fallthru
      _
    // Predicated region
    $region18: #{tpu_custom_call.1} parent=1 // pred_check
      _
    $region19: #{tpu_custom_call.1} parent=1 // pred_check_branch
      %21 = sbr.rel (0) target = $region21
    $region20: #{tpu_custom_call.1} parent=1 // pred_region
      _
    $region21: #{tpu_custom_call.1} parent=1 // pred_fallthru
      _
    %v22 = vld [vmem:[%s0] sm:$0xff]
    %v23 = vld [vmem:[%s1] sm:$0xff]
    %v24 = vld [vmem:[%s1 + $0x8] sm:$0xff]
    %v25 = vld [vmem:[%s1 + $0x10] sm:$0xff]
    %v26 = vld [vmem:[%s1 + $0x18] sm:$0xff]
    %v27 = vld [vmem:[%s1 + $0x20] sm:$0xff]
    %v28 = vld [vmem:[%s1 + $0x28] sm:$0xff]
    %v29 = vld [vmem:[%s1 + $0x30] sm:$0xff]
    %v30 = vld [vmem:[%s1 + $0x38] sm:$0xff]
    %v31 = vld [vmem:[%s2] sm:$0xff]
    %v32 = vld [vmem:[%s2 + $0x8] sm:$0xff]
    %v33 = vld [vmem:[%s2 + $0x10] sm:$0xff]
    %v34 = vld [vmem:[%s2 + $0x18] sm:$0xff]
    %v35 = vld [vmem:[%s2 + $0x20] sm:$0xff]
    %v36 = vld [vmem:[%s2 + $0x28] sm:$0xff]
    %v37 = vld [vmem:[%s2 + $0x30] sm:$0xff]
    %v38 = vld [vmem:[%s2 + $0x38] sm:$0xff]
    %40 = vset.pattern.permute.xlu0 0
    %41 = vperm.xlu0 %40, %v31
    %v42 = vpop.permute.xlu0 %41
    %45 = vset.pattern.permute.xlu0 0
    %46 = vperm.xlu0 %45, %v32
    %v47 = vpop.permute.xlu0 %46
    %50 = vset.pattern.permute.xlu0 0
    %51 = vperm.xlu0 %50, %v33
    %v52 = vpop.permute.xlu0 %51
    %55 = vset.pattern.permute.xlu0 0
    %56 = vperm.xlu0 %55, %v34
    %v57 = vpop.permute.xlu0 %56
    %60 = vset.pattern.permute.xlu0 0
    %61 = vperm.xlu0 %60, %v35
    %v62 = vpop.permute.xlu0 %61
    %65 = vset.pattern.permute.xlu0 0
    %66 = vperm.xlu0 %65, %v36
    %v67 = vpop.permute.xlu0 %66
    %70 = vset.pattern.permute.xlu0 0
    %71 = vperm.xlu0 %70, %v37
    %v72 = vpop.permute.xlu0 %71
    %75 = vset.pattern.permute.xlu0 0
    %76 = vperm.xlu0 %75, %v38
    %v77 = vpop.permute.xlu0 %76
    %vm79 = vcmask 64512
    %v81 = vsel %vm79, %v23, 0
    %v84 = vsel %vm79, %v24, 0
    %v87 = vsel %vm79, %v25, 0
    %v90 = vsel %vm79, %v26, 0
    %v93 = vsel %vm79, %v27, 0
    %v96 = vsel %vm79, %v28, 0
    %v99 = vsel %vm79, %v29, 0
    %v102 = vsel %vm79, %v30, 0
    %v105 = vsel %vm79, %v22, 0
    %107 = vmatprep.subr.mxu0 0.0
    %108 = vmatpush1.xpose.msra.mxu0 %v105
    %109 = vmatprep.subr.mxu0 0.0
    %110 = vmatpush1.xpose.msra.mxu0 0.0
    %111 = vmatprep.subr.mxu0 0.0
    %112 = vmatpush1.xpose.msra.mxu0 0.0
    %113 = vmatprep.subr.mxu0 0.0
    %114 = vmatpush1.xpose.msra.mxu0 0.0
    %115 = vmatprep.subr.mxu0 0.0
    %116 = vmatpush1.xpose.msra.mxu0 0.0
    %117 = vmatprep.subr.mxu0 0.0
    %118 = vmatpush1.xpose.msra.mxu0 0.0
    %119 = vmatprep.subr.mxu0 0.0
    %120 = vmatpush1.xpose.msra.mxu0 0.0
    %121 = vmatprep.subr.mxu0 0.0
    %122 = vmatpush1.xpose.msra.mxu0 0.0
    %123 = vmatprep.subr.mxu0 0.0
    %124 = vmatpush1.xpose.msra.mxu0 0.0
    %125 = vmatprep.subr.mxu0 0.0
    %126 = vmatpush1.xpose.msra.mxu0 0.0
    %127 = vmatprep.subr.mxu0 0.0
    %128 = vmatpush1.xpose.msra.mxu0 0.0
    %129 = vmatprep.subr.mxu0 0.0
    %130 = vmatpush1.xpose.msra.mxu0 0.0
    %131 = vmatprep.subr.mxu0 0.0
    %132 = vmatpush1.xpose.msra.mxu0 0.0
    %133 = vmatprep.subr.mxu0 0.0
    %134 = vmatpush1.xpose.msra.mxu0 0.0
    %135 = vmatprep.subr.mxu0 0.0
    %136 = vmatpush1.xpose.msra.mxu0 0.0
    %137 = vmatprep.subr.mxu0 0.0
    %138 = vmatpush1.xpose.msra.mxu0 0.0
    %139 = vmatprep.subr.mxu0 0.0
    %140 = vmatpush1.xpose.msra.mxu0 0.0
    %141 = vmatprep.subr.mxu0 0.0
    %142 = vmatpush1.xpose.msra.mxu0 0.0
    %143 = vmatprep.subr.mxu0 0.0
    %144 = vmatpush1.xpose.msra.mxu0 0.0
    %145 = vmatprep.subr.mxu0 0.0
    %146 = vmatpush1.xpose.msra.mxu0 0.0
    %147 = vmatprep.subr.mxu0 0.0
    %148 = vmatpush1.xpose.msra.mxu0 0.0
    %149 = vmatprep.subr.mxu0 0.0
    %150 = vmatpush1.xpose.msra.mxu0 0.0
    %151 = vmatprep.subr.mxu0 0.0
    %152 = vmatpush1.xpose.msra.mxu0 0.0
    %153 = vmatprep.subr.mxu0 0.0
    %154 = vmatpush1.xpose.msra.mxu0 0.0
    %155 = vmatprep.subr.mxu0 0.0
    %156 = vmatpush1.xpose.msra.mxu0 0.0
    %157 = vmatprep.subr.mxu0 0.0
    %158 = vmatpush1.xpose.msra.mxu0 0.0
    %159 = vmatprep.subr.mxu0 0.0
    %160 = vmatpush1.xpose.msra.mxu0 0.0
    %161 = vmatprep.subr.mxu0 0.0
    %162 = vmatpush1.xpose.msra.mxu0 0.0
    %163 = vmatprep.subr.mxu0 0.0
    %164 = vmatpush1.xpose.msra.mxu0 0.0
    %165 = vmatprep.subr.mxu0 0.0
    %166 = vmatpush1.xpose.msra.mxu0 0.0
    %167 = vmatprep.subr.mxu0 0.0
    %168 = vmatpush1.xpose.msra.mxu0 0.0
    %169 = vmatprep.subr.mxu0 0.0
    %170 = vmatpush1.xpose.msra.mxu0 0.0
    %171 = vmatprep.mubr.f32.mxu0 0.0
    %172 = vmatmul.mubr.f32.gmra.mrb[0].mxu0 %v81
    %v173 = vpop.f32.mrb[0].mxu0
    %v174 = vadd.f32 %v42, %v173
    %v175 = vpop.f32.mrb[0].mxu0
    %176 = vmatprep.mubr.f32.mxu0 0.0
    %177 = vmatmul.mubr.f32.gmra.mrb[0].mxu0 %v84
    %v178 = vpop.f32.mrb[0].mxu0
    %v179 = vadd.f32 %v47, %v178
    %v180 = vpop.f32.mrb[0].mxu0
    %181 = vmatprep.mubr.f32.mxu0 0.0
    %182 = vmatmul.mubr.f32.gmra.mrb[0].mxu0 %v87
    %v183 = vpop.f32.mrb[0].mxu0
    %v184 = vadd.f32 %v52, %v183
    %v185 = vpop.f32.mrb[0].mxu0
    %186 = vmatprep.mubr.f32.mxu0 0.0
    %187 = vmatmul.mubr.f32.gmra.mrb[0].mxu0 %v90
    %v188 = vpop.f32.mrb[0].mxu0
    %v189 = vadd.f32 %v57, %v188
    %v190 = vpop.f32.mrb[0].mxu0
    %191 = vmatprep.mubr.f32.mxu0 0.0
    %192 = vmatmul.mubr.f32.gmra.mrb[0].mxu0 %v93
    %v193 = vpop.f32.mrb[0].mxu0
    %v194 = vadd.f32 %v62, %v193
    %v195 = vpop.f32.mrb[0].mxu0
    %196 = vmatprep.mubr.f32.mxu0 0.0
    %197 = vmatmul.mubr.f32.gmra.mrb[0].mxu0 %v96
    %v198 = vpop.f32.mrb[0].mxu0
    %v199 = vadd.f32 %v67, %v198
    %v200 = vpop.f32.mrb[0].mxu0
    %201 = vmatprep.mubr.f32.mxu0 0.0
    %202 = vmatmul.mubr.f32.gmra.mrb[0].mxu0 %v99
    %v203 = vpop.f32.mrb[0].mxu0
    %v204 = vadd.f32 %v72, %v203
    %v205 = vpop.f32.mrb[0].mxu0
    %206 = vmatprep.mubr.f32.mxu0 0.0
    %207 = vmatmul.mubr.f32.gmra.mrb[0].mxu0 %v102
    %v208 = vpop.f32.mrb[0].mxu0
    %v209 = vadd.f32 %v77, %v208
    %v210 = vpop.f32.mrb[0].mxu0
    %211 = vdwg.mxu0
    %v212 = vtanh.pop %v174
    %v213 = vtanh.pop %v179
    %v214 = vtanh.pop %v184
    %v215 = vtanh.pop %v189
    %v216 = vtanh.pop %v194
    %v217 = vtanh.pop %v199
    %v218 = vtanh.pop %v204
    %v219 = vtanh.pop %v209
    %v220 = vld [vmem:[%s3] sm:$0xff]
    %v221 = vld [vmem:[%s3 + $0x8] sm:$0xff]
    %v222 = vld [vmem:[%s3 + $0x10] sm:$0xff]
    %v223 = vld [vmem:[%s3 + $0x18] sm:$0xff]
    %v224 = vld [vmem:[%s3 + $0x20] sm:$0xff]
    %v225 = vld [vmem:[%s3 + $0x28] sm:$0xff]
    %v226 = vld [vmem:[%s3 + $0x30] sm:$0xff]
    %v227 = vld [vmem:[%s3 + $0x38] sm:$0xff]
    %229 = vset.pattern.permute.xlu0 0
    %230 = vperm.xlu0 %229, %v220
    %v231 = vpop.permute.xlu0 %230
    %234 = vset.pattern.permute.xlu0 0
    %235 = vperm.xlu0 %234, %v221
    %v236 = vpop.permute.xlu0 %235
    %239 = vset.pattern.permute.xlu0 0
    %240 = vperm.xlu0 %239, %v222
    %v241 = vpop.permute.xlu0 %240
    %244 = vset.pattern.permute.xlu0 0
    %245 = vperm.xlu0 %244, %v223
    %v246 = vpop.permute.xlu0 %245
    %249 = vset.pattern.permute.xlu0 0
    %250 = vperm.xlu0 %249, %v224
    %v251 = vpop.permute.xlu0 %250
    %254 = vset.pattern.permute.xlu0 0
    %255 = vperm.xlu0 %254, %v225
    %v256 = vpop.permute.xlu0 %255
    %259 = vset.pattern.permute.xlu0 0
    %260 = vperm.xlu0 %259, %v226
    %v261 = vpop.permute.xlu0 %260
    %264 = vset.pattern.permute.xlu0 0
    %265 = vperm.xlu0 %264, %v227
    %v266 = vpop.permute.xlu0 %265
    %v268 = vmul.f32 %v212, %v231
    %v269 = vmul.f32 %v213, %v236
    %v270 = vmul.f32 %v214, %v241
    %v271 = vmul.f32 %v215, %v246
    %v272 = vmul.f32 %v216, %v251
    %v273 = vmul.f32 %v217, %v256
    %v274 = vmul.f32 %v218, %v261
    %v275 = vmul.f32 %v219, %v266
    %v276 = vsel %vm79, %v268, 0.0
    %v277 = vsel %vm79, %v269, 0.0
    %v278 = vadd.f32 %v276, %v277
    %v279 = vsel %vm79, %v270, 0.0
    %v280 = vadd.f32 %v278, %v279
    %v281 = vsel %vm79, %v271, 0.0
    %v282 = vadd.f32 %v280, %v281
    %v283 = vsel %vm79, %v272, 0.0
    %v284 = vadd.f32 %v282, %v283
    %v285 = vsel %vm79, %v273, 0.0
    %v286 = vadd.f32 %v284, %v285
    %v287 = vsel %vm79, %v274, 0.0
    %v288 = vadd.f32 %v286, %v287
    %v289 = vsel %vm79, %v275, 0.0
    %v290 = vadd.f32 %v288, %v289
    %v291 = vrot.slane %v290, 4
    %v292 = vadd.f32 %v290, %v291
    %v293 = vrot.slane %v292, 2
    %v294 = vadd.f32 %v292, %v293
    %v295 = vrot.slane %v294, 1
    %v296 = vadd.f32 %v294, %v295
    %s297 = sld [smem:[#allocation2]]
    %v298 = vstv %s297
    %v299 = vadd.f32 %v296, %v298
    %vm300 = vcmask 57344
    %301 = vst.msk [vmem:[#allocation3] sm:$0x1] %vm300, %v299
    // Predicated region
    $region22: #{tpu_custom_call.1} parent=1 // pred_check
      _
    $region23: #{tpu_custom_call.1} parent=1 // pred_check_branch
      %303 = sbr.rel (0) target = $region25
    $region24: #{tpu_custom_call.1} parent=1 // pred_region
      %s305 = ssub.s32 16, 16
      %306 = vsyncadd [#allocation4], %s305
      %s308 = sshll.u32 [#allocation3], 4
      %s309 = int_to_ptr.vmem [resolvable:$true] %s308
      %311 = dma.vmem_to_hbm [thread:$0]  %s309, 16, %s5, [#allocation4]
    $region25: #{tpu_custom_call.1} parent=1 // pred_fallthru
      _
    // Predicated region
    $region26: #{tpu_custom_call.1} parent=1 // pred_check
      _
    $region27: #{tpu_custom_call.1} parent=1 // pred_check_branch
      %313 = sbr.rel (0) target = $region29
    $region28: #{tpu_custom_call.1} parent=1 // pred_region
      %314 = dma.done [#allocation4], 16
    $region29: #{tpu_custom_call.1} parent=1 // pred_fallthru
      _
    %315 = vsyncpa [#allocation4], 1

</llo_original>
